<compile_context>
chip_gen: v6e
topology: v6e:2x2x1
jax: 0.10.0
libtpu: 0.0.40
codegen_flags: <defaults>
</compile_context>

<pallas_src>
import functools
import itertools

import jax
import jax.numpy as jnp
import numpy as np
from jax.experimental import pallas as pl
from jax.experimental.pallas import tpu as pltpu


def _round_up(x, m):
    return ((x + m - 1) // m) * m


# aux row layout (all rows are [T_pad] f32):
#  0.. 3  target sub boxes  (cx, cy, w, h)      -> L1 cost
#  4.. 7  target obj boxes  (cx, cy, w, h)      -> L1 cost
#  8..12  target sub corners x0,y0,x1,y1, area  -> giou
# 13..17  target obj corners x0,y0,x1,y1, area  -> giou
# 18      obj_nonzero (0/1)
# 19      obj_allzero (0/1)
# 20      tvl_sum                      (verb only)
# 21      1 / (tvl_sum + 1e-4)         (verb only)
# 22      1 / (sum(1-tvl) + 1e-4)      (verb only)
_AUX_TSUB, _AUX_TOBJ = 0, 4
_AUX_SUBC, _AUX_OBJC = 8, 13
_AUX_NONZERO, _AUX_ALLZERO = 18, 19
_AUX_TVLSUM, _AUX_INVPOS, _AUX_INVNEG = 20, 21, 22


# ----------------------------- Pallas kernel -------------------------------
def _cost_kernel(*refs, C_obj, V, w_obj, w_verb, w_bbox, w_giou, use_verb):
    if use_verb:
        pred_ref, onehot_ref, aux_ref, verb_ref, c_ref = refs
    else:
        pred_ref, onehot_ref, aux_ref, c_ref = refs

    pred = pred_ref[...]                          # [TQ, P]  f32
    aux = aux_ref[...]                            # [N_AUX, T_pad] f32

    box_off = C_obj + (V if use_verb else 0)
    sub = pred[:, box_off:box_off + 4]            # [TQ, 4]
    obj = pred[:, box_off + 4:box_off + 8]        # [TQ, 4]

    tsub = aux[_AUX_TSUB:_AUX_TSUB + 4, :]        # [4, T]
    tobj = aux[_AUX_TOBJ:_AUX_TOBJ + 4, :]
    ts_c = tuple(aux[_AUX_SUBC + k:_AUX_SUBC + k + 1, :] for k in range(5))
    to_c = tuple(aux[_AUX_OBJC + k:_AUX_OBJC + k + 1, :] for k in range(5))
    obj_nonzero = aux[_AUX_NONZERO:_AUX_NONZERO + 1, :]
    obj_allzero = aux[_AUX_ALLZERO:_AUX_ALLZERO + 1, :]

    # trace-time weight folding helpers (weights are Python floats).
    def _axpy(total, x, w):                       # total + w*x
        if w == 0.0:
            return total
        t = x if w == 1.0 else w * x
        return t if total is None else total + t

    def _axmy(total, x, w):                       # total - w*x
        if w == 0.0:
            return total
        t = x if w == 1.0 else w * x
        return (-t) if total is None else total - t

    total = None

    # ---- pairwise generalized IoU (single reciprocal per call) -------------
    if w_giou != 0.0:
        def corners_pred(a):
            x0 = a[:, 0:1] - 0.5 * a[:, 2:3]
            y0 = a[:, 1:2] - 0.5 * a[:, 3:4]
            x1 = a[:, 0:1] + 0.5 * a[:, 2:3]
            y1 = a[:, 1:2] + 0.5 * a[:, 3:4]
            return x0, y0, x1, y1, (x1 - x0) * (y1 - y0)

        def neg_giou(pa, tb):                     # returns -giou directly
            ax0, ay0, ax1, ay1, area_a = pa
            bx0, by0, bx1, by1, area_b = tb
            iw = jnp.maximum(jnp.minimum(ax1, bx1) - jnp.maximum(ax0, bx0), 0.0)
            ih = jnp.maximum(jnp.minimum(ay1, by1) - jnp.maximum(ay0, by0), 0.0)
            inter = iw * ih
            union = area_a + area_b - inter
            cw = jnp.maximum(ax1, bx1) - jnp.minimum(ax0, bx0)
            ch = jnp.maximum(ay1, by1) - jnp.minimum(ay0, by0)
            carea = jnp.maximum(cw, 0.0) * jnp.maximum(ch, 0.0)
            # -giou = (union*(carea-union) - inter*carea) / (union*carea)
            num_neg = union * (carea - union) - inter * carea
            return num_neg * pl.reciprocal(union * carea + 1e-20, approx=False)

        ng_sub = neg_giou(corners_pred(sub), ts_c)
        ng_obj = neg_giou(corners_pred(obj), to_c) + ng_sub * obj_allzero
        total = _axpy(total, jnp.maximum(ng_sub, ng_obj), w_giou)

    # ---- L1 cdist (pairwise) ------------------------------------------------
    if w_bbox != 0.0:
        def cdist_l1(a, bt):
            acc = jnp.abs(a[:, 0:1] - bt[0:1, :])
            for k in range(1, 4):
                acc = acc + jnp.abs(a[:, k:k + 1] - bt[k:k + 1, :])
            return acc                            # [TQ, T]

        cost_sub_bbox = cdist_l1(sub, tsub)
        cost_obj_bbox = cdist_l1(obj, tobj) * obj_nonzero
        total = _axpy(total, jnp.maximum(cost_sub_bbox, cost_obj_bbox), w_bbox)

    # ---- obj-class cost: softmax + one-hot gather matmul (sign folded) ------
    if w_obj != 0.0:
        logits = pred[:, 0:C_obj]                 # [TQ, C]
        m = jnp.max(logits, axis=-1, keepdims=True)
        e = jnp.exp(logits - m)
        prob = e * pl.reciprocal(jnp.sum(e, axis=-1, keepdims=True), approx=False)
        gathered = jnp.dot(prob, onehot_ref[...],
                           preferred_element_type=jnp.float32)   # [TQ, T]
        total = _axmy(total, gathered, w_obj)

    # ---- verb-class cost: one MXU matmul + algebraic identity ---------------
    if use_verb:
        vp = jax.nn.sigmoid(pred[:, C_obj:C_obj + V])            # [TQ, V]
        tvl = verb_ref[...]                                      # [V, T]
        tvl_sum = aux[_AUX_TVLSUM:_AUX_TVLSUM + 1, :]            # [1, T]
        inv_pos = aux[_AUX_INVPOS:_AUX_INVPOS + 1, :]
        inv_neg = aux[_AUX_INVNEG:_AUX_INVNEG + 1, :]
        pos_num = jnp.dot(vp, tvl, preferred_element_type=jnp.float32)
        vp_sum = jnp.sum(vp, axis=-1, keepdims=True)             # [TQ, 1]
        # (1-vp) @ (1-tvl) == V - rowsum(vp) - colsum(tvl) + vp @ tvl
        neg_num = (float(V) - vp_sum) - tvl_sum + pos_num
        verb_term = pos_num * inv_pos + neg_num * inv_neg
        total = _axmy(total, verb_term, 0.5 * w_verb)

    if total is None:
        total = jnp.zeros((pred.shape[0], aux.shape[1]), jnp.float32)
    c_ref[...] = total


# --------------------------- call construction ------------------------------
def _choose_tq(Q, T_pad):
    # >= 2 grid steps whenever Q allows it so ("parallel",) engages both v7x
    # TensorCores; otherwise grow the tile (amortize ~0.35us/step overhead),
    # capped so the double-buffered f32 output block stays small in VMEM.
    half = _round_up(max(-(-Q // 2), 1), 8)
    vmem_cap = max(8, ((1 << 20) // T_pad) // 8 * 8)
    return max(8, min(half, 1024, vmem_cap))


@functools.lru_cache(maxsize=None)
def _build_matcher_fn(Q, T, Q_pad, T_pad, TQ, C_obj, V, P, n_aux,
                      w_obj, w_verb, w_bbox, w_giou, use_verb):
    kernel = functools.partial(_cost_kernel, C_obj=C_obj, V=V, w_obj=w_obj,
                               w_verb=w_verb, w_bbox=w_bbox, w_giou=w_giou,
                               use_verb=use_verb)

    in_specs = [pl.BlockSpec((TQ, P), lambda i: (i, 0)),          # pred (tiled)
                pl.BlockSpec((C_obj, T_pad), lambda i: (0, 0)),   # onehot (res)
                pl.BlockSpec((n_aux, T_pad), lambda i: (0, 0))]   # aux (res)
    if use_verb:
        in_specs.append(pl.BlockSpec((V, T_pad), lambda i: (0, 0)))

    call = pl.pallas_call(
        kernel,
        out_shape=jax.ShapeDtypeStruct((Q_pad, T_pad), jnp.float32),
        grid=(Q_pad // TQ,),
        in_specs=in_specs,
        out_specs=pl.BlockSpec((TQ, T_pad), lambda i: (i, 0)),
        compiler_params=pltpu.CompilerParams(
            dimension_semantics=("parallel",),        # megacore sharding (v7x)
            vmem_limit_bytes=32 * 1024 * 1024),
    )

    def fn(*ins):
        return call(*ins)[:Q, :T]                 # strip padding ON DEVICE

    return jax.jit(fn)


# --------------------------- host-side matcher -----------------------------
def _lsa(cost):
    """linear_sum_assignment (scipy if available, brute force fallback)."""
    try:
        from scipy.optimize import linear_sum_assignment
        return linear_sum_assignment(cost)
    except Exception:
        nr, nc = cost.shape
        best, best_assign = None, None
        for rows in itertools.permutations(range(nr), nc):
            s = sum(cost[r, c] for c, r in enumerate(rows))
            if best is None or s < best:
                best, best_assign = s, rows
        pairs = sorted(zip(best_assign, range(nc)))
        return (np.array([p[0] for p in pairs], np.int64),
                np.array([p[1] for p in pairs], np.int64))


def hungarian_matcher_hoi_mask(outputs, targets, *, cost_obj_class=1.0,
                               cost_verb_class=1.0, cost_bbox=1.0,
                               cost_giou=1.0, use_verb=True, query_mask=None):
    assert (cost_obj_class != 0 or cost_verb_class != 0 or cost_bbox != 0
            or cost_giou != 0), "all costs cant be 0"
    bs, num_queries, C_obj = outputs["pred_obj_logits"].shape
    Q = bs * num_queries
    use_verb = bool(use_verb) and cost_verb_class != 0.0
    V = int(outputs["pred_verb_logits"].shape[-1]) if use_verb else 0

    sizes = [int(t["obj_labels"].shape[0]) for t in targets]
    T = sum(sizes)
    if T == 0:
        empty = np.zeros((bs, num_queries, 0), np.float32)
        return ([(np.zeros(0, np.int64), np.zeros(0, np.int64)) for _ in targets],
                empty)

    T_pad = max(128, _round_up(T, 128))           # lane-dense output slab
    TQ = _choose_tq(Q, T_pad)
    Q_pad = _round_up(Q, TQ)

    # ---- pack predictions into one slab: [Q_pad, C_obj (+V) + 8] -----------
    parts = [outputs["pred_obj_logits"].reshape(Q, C_obj).astype(jnp.float32)]
    if use_verb:
        parts.append(outputs["pred_verb_logits"].reshape(Q, V).astype(jnp.float32))
    parts += [outputs["pred_sub_boxes"].reshape(Q, 4).astype(jnp.float32),
              outputs["pred_obj_boxes"].reshape(Q, 4).astype(jnp.float32)]
    pred = jnp.concatenate(parts, axis=-1)
    P = int(pred.shape[-1])
    if Q_pad > Q:
        pred = jnp.pad(pred, ((0, Q_pad - Q), (0, 0)))

    # ---- target-side constants (precomputed once, resident in VMEM) --------
    tl = jnp.concatenate([t["obj_labels"] for t in targets])
    ts = jnp.concatenate([t["sub_boxes"] for t in targets]).astype(jnp.float32)
    to = jnp.concatenate([t["obj_boxes"] for t in targets]).astype(jnp.float32)

    def _corners(b):                              # b: [T, 4] cxcywh
        x0 = b[:, 0] - 0.5 * b[:, 2]
        y0 = b[:, 1] - 0.5 * b[:, 3]
        x1 = b[:, 0] + 0.5 * b[:, 2]
        y1 = b[:, 1] + 0.5 * b[:, 3]
        return x0, y0, x1, y1, (x1 - x0) * (y1 - y0)

    sx0, sy0, sx1, sy1, sar = _corners(ts)
    ox0, oy0, ox1, oy1, oar = _corners(to)
    obj_nonzero = jnp.any(to != 0.0, axis=1).astype(jnp.float32)
    rows = [ts[:, 0], ts[:, 1], ts[:, 2], ts[:, 3],
            to[:, 0], to[:, 1], to[:, 2], to[:, 3],
            sx0, sy0, sx1, sy1, sar,
            ox0, oy0, ox1, oy1, oar,
            obj_nonzero, 1.0 - obj_nonzero]
    if use_verb:
        tv = jnp.concatenate([t["verb_labels"] for t in targets]).astype(jnp.float32)
        tvl_sum = jnp.sum(tv, axis=1)
        rows += [tvl_sum,
                 1.0 / (tvl_sum + 0.0001),
                 1.0 / (jnp.sum(1.0 - tv, axis=1) + 0.0001)]
    aux = jnp.stack(rows, axis=0)                 # [N_AUX, T]
    n_aux = int(aux.shape[0])

    def pad_t(x_t):                               # [rows, T] -> [rows, T_pad]
        return jnp.pad(x_t, ((0, 0), (0, T_pad - T))) if T_pad > T else x_t

    onehot = pad_t(jax.nn.one_hot(tl, C_obj, dtype=jnp.float32).T)
    aux = pad_t(aux)
    inputs = [pred, onehot, aux]
    if use_verb:
        inputs.append(pad_t(tv.T))

    fn = _build_matcher_fn(Q, T, Q_pad, T_pad, TQ, C_obj, V, P, n_aux,
                           float(cost_obj_class), float(cost_verb_class),
                           float(cost_bbox), float(cost_giou), use_verb)
    C = jax.block_until_ready(fn(*inputs))        # [Q, T] on device

    Cnp = np.asarray(C)
    if query_mask is not None:
        qm = np.asarray(query_mask).reshape(Q).astype(bool)
        Cnp = np.where(qm[:, None], 1e9, Cnp)     # large finite sentinel
    Cnp = Cnp.reshape(bs, num_queries, T)

    indices, off = [], 0
    for i, s in enumerate(sizes):
        r, c = _lsa(Cnp[i, :, off:off + s])
        indices.append((np.asarray(r, np.int64), np.asarray(c, np.int64)))
        off += s
    return indices, Cnp


# ------------------------------ reference ----------------------------------
def _reference_cost(outputs, targets, w):
    def np32(x):
        return np.asarray(x, np.float32)

    bs, nq, C_obj = outputs["pred_obj_logits"].shape
    Q = bs * nq
    logits = np32(outputs["pred_obj_logits"]).reshape(Q, C_obj)
    prob = np.exp(logits - logits.max(-1, keepdims=True))
    prob /= prob.sum(-1, keepdims=True)
    sub = np32(outputs["pred_sub_boxes"]).reshape(Q, 4)
    obj = np32(outputs["pred_obj_boxes"]).reshape(Q, 4)
    vlog = np32(outputs["pred_verb_logits"]).reshape(Q, -1)
    vprob = 1.0 / (1.0 + np.exp(-vlog))

    tl = np.concatenate([np.asarray(t["obj_labels"]) for t in targets])
    ts = np.concatenate([np32(t["sub_boxes"]) for t in targets])
    to = np.concatenate([np32(t["obj_boxes"]) for t in targets])
    tv = np.concatenate([np32(t["verb_labels"]) for t in targets])

    cost_obj_class = -prob[:, tl]
    cdist = lambda a, b: np.abs(a[:, None, :] - b[None, :, :]).sum(-1)
    cost_sub_bbox = cdist(sub, ts)
    cost_obj_bbox = cdist(obj, to) * (to != 0).any(1)[None, :]
    cost_bbox = np.maximum(cost_sub_bbox, cost_obj_bbox)

    def xyxy(b):
        cx, cy, w_, h_ = b[:, 0], b[:, 1], b[:, 2], b[:, 3]
        return np.stack([cx - w_ / 2, cy - h_ / 2, cx + w_ / 2, cy + h_ / 2], -1)

    def giou(a, b):
        a, b = xyxy(a), xyxy(b)
        area_a = (a[:, 2] - a[:, 0]) * (a[:, 3] - a[:, 1])
        area_b = (b[:, 2] - b[:, 0]) * (b[:, 3] - b[:, 1])
        lt = np.maximum(a[:, None, :2], b[None, :, :2])
        rb = np.minimum(a[:, None, 2:], b[None, :, 2:])
        wh = np.clip(rb - lt, 0, None)
        inter = wh[..., 0] * wh[..., 1]
        union = area_a[:, None] + area_b[None, :] - inter
        iou = inter / union
        lt2 = np.minimum(a[:, None, :2], b[None, :, :2])
        rb2 = np.maximum(a[:, None, 2:], b[None, :, 2:])
        wh2 = np.clip(rb2 - lt2, 0, None)
        carea = wh2[..., 0] * wh2[..., 1]
        return iou - (carea - union) / carea

    cost_sub_giou = -giou(sub, ts)
    cost_obj_giou = -giou(obj, to) + cost_sub_giou * (to == 0).all(1)[None, :]
    cost_giou = np.maximum(cost_sub_giou, cost_obj_giou)

    tvt = tv.T
    cost_verb = -(vprob @ tvt / (tvt.sum(0, keepdims=True) + 1e-4)
                  + (1 - vprob) @ (1 - tvt) / ((1 - tvt).sum(0, keepdims=True) + 1e-4)) / 2
    C = (w["obj"] * cost_obj_class + w["bbox"] * cost_bbox
         + w["giou"] * cost_giou + w["verb"] * cost_verb)
    return C.reshape(bs, nq, -1)


# -------------------------------- demo --------------------------------------
if __name__ == "__main__":
    key = jax.random.PRNGKey(0)
    bs, nq, C_obj, V = 2, 8, 12, 16
    sizes = [3, 3]
    T = sum(sizes)

    ks = jax.random.split(key, 10)
    outputs = {
        "pred_obj_logits": jax.random.normal(ks[0], (bs, nq, C_obj), jnp.float32),
        "pred_verb_logits": jax.random.normal(ks[1], (bs, nq, V), jnp.float32),
        "pred_sub_boxes": jnp.concatenate(
            [jax.random.uniform(ks[2], (bs, nq, 2), minval=0.2, maxval=0.8),
             jax.random.uniform(ks[3], (bs, nq, 2), minval=0.05, maxval=0.3)], -1),
        "pred_obj_boxes": jnp.concatenate(
            [jax.random.uniform(ks[4], (bs, nq, 2), minval=0.2, maxval=0.8),
             jax.random.uniform(ks[5], (bs, nq, 2), minval=0.05, maxval=0.3)], -1),
    }

    targets, kidx = [], 6
    for b, s in enumerate(sizes):
        kk = jax.random.split(ks[kidx + b], 5)
        obj_boxes = jnp.concatenate(
            [jax.random.uniform(kk[2], (s, 2), minval=0.2, maxval=0.8),
             jax.random.uniform(kk[3], (s, 2), minval=0.05, maxval=0.3)], -1)
        if b == 1:  # exercise the "no object box" path
            obj_boxes = obj_boxes.at[1].set(0.0)
        targets.append({
            "obj_labels": jax.random.randint(kk[0], (s,), 0, C_obj),
            "sub_boxes": jnp.concatenate(
                [jax.random.uniform(kk[1], (s, 2), minval=0.2, maxval=0.8),
                 jax.random.uniform(kk[4], (s, 2), minval=0.05, maxval=0.3)], -1),
            "obj_boxes": obj_boxes,
            "verb_labels": (jax.random.uniform(kk[4], (s, V)) < 0.3).astype(jnp.float32),
        })

    indices, C_kernel = hungarian_matcher_hoi_mask(outputs, targets)

    C_ref = _reference_cost(outputs, targets,
                            {"obj": 1.0, "verb": 1.0, "bbox": 1.0, "giou": 1.0})
    np.testing.assert_allclose(C_kernel, C_ref, rtol=1e-4, atol=1e-4)
    assert len(indices) == bs and all(len(r) == s for (r, _), s in zip(indices, sizes))
    print("KERNEL_OK")
</pallas_src>

<mosaic_0001>
module attributes {stable_mosaic.version = 11 : i64} {
  func.func @_cost_kernel(%arg0: i32, %arg1: memref<8x36xf32, #tpu.memory_space<vmem>>, %arg2: memref<12x128xf32, #tpu.memory_space<vmem>>, %arg3: memref<23x128xf32, #tpu.memory_space<vmem>>, %arg4: memref<16x128xf32, #tpu.memory_space<vmem>>, %arg5: memref<8x128xf32, #tpu.memory_space<vmem>>) attributes {dimension_semantics = [#tpu.dimension_semantics<parallel>], iteration_bounds = array<i64: 2>, scalar_prefetch = 0 : i64, scratch_operands = 0 : i64, tpu.core_type = #tpu.core_type<tc>, window_params = [{transform_indices = @transform_0, window_bounds = array<i64: 8, 36>}, {pipeline_mode = #tpu.pipeline_mode<synchronous>, transform_indices = @transform_1, window_bounds = array<i64: 12, 128>}, {pipeline_mode = #tpu.pipeline_mode<synchronous>, transform_indices = @transform_2, window_bounds = array<i64: 23, 128>}, {pipeline_mode = #tpu.pipeline_mode<synchronous>, transform_indices = @transform_3, window_bounds = array<i64: 16, 128>}, {transform_indices = @transform_4, window_bounds = array<i64: 8, 128>}]} {
    %c0 = arith.constant 0 : index
    %c0_0 = arith.constant 0 : index
    %0 = vector.load %arg1[%c0, %c0_0] : memref<8x36xf32, #tpu.memory_space<vmem>>, vector<8x36xf32>
    %c0_1 = arith.constant 0 : index
    %c0_2 = arith.constant 0 : index
    %1 = vector.load %arg3[%c0_1, %c0_2] : memref<23x128xf32, #tpu.memory_space<vmem>>, vector<23x128xf32>
    %2 = vector.extract_strided_slice %0 {offsets = [0, 28], sizes = [8, 4], strides = [1, 1]} : vector<8x36xf32> to vector<8x4xf32>
    %3 = vector.extract_strided_slice %0 {offsets = [0, 32], sizes = [8, 4], strides = [1, 1]} : vector<8x36xf32> to vector<8x4xf32>
    %4 = vector.extract_strided_slice %1 {offsets = [0, 0], sizes = [4, 128], strides = [1, 1]} : vector<23x128xf32> to vector<4x128xf32>
    %5 = vector.extract_strided_slice %1 {offsets = [4, 0], sizes = [4, 128], strides = [1, 1]} : vector<23x128xf32> to vector<4x128xf32>
    %6 = vector.extract_strided_slice %1 {offsets = [8, 0], sizes = [1, 128], strides = [1, 1]} : vector<23x128xf32> to vector<1x128xf32>
    %7 = vector.extract_strided_slice %1 {offsets = [9, 0], sizes = [1, 128], strides = [1, 1]} : vector<23x128xf32> to vector<1x128xf32>
    %8 = vector.extract_strided_slice %1 {offsets = [10, 0], sizes = [1, 128], strides = [1, 1]} : vector<23x128xf32> to vector<1x128xf32>
    %9 = vector.extract_strided_slice %1 {offsets = [11, 0], sizes = [1, 128], strides = [1, 1]} : vector<23x128xf32> to vector<1x128xf32>
    %10 = vector.extract_strided_slice %1 {offsets = [12, 0], sizes = [1, 128], strides = [1, 1]} : vector<23x128xf32> to vector<1x128xf32>
    %11 = vector.extract_strided_slice %1 {offsets = [13, 0], sizes = [1, 128], strides = [1, 1]} : vector<23x128xf32> to vector<1x128xf32>
    %12 = vector.extract_strided_slice %1 {offsets = [14, 0], sizes = [1, 128], strides = [1, 1]} : vector<23x128xf32> to vector<1x128xf32>
    %13 = vector.extract_strided_slice %1 {offsets = [15, 0], sizes = [1, 128], strides = [1, 1]} : vector<23x128xf32> to vector<1x128xf32>
    %14 = vector.extract_strided_slice %1 {offsets = [16, 0], sizes = [1, 128], strides = [1, 1]} : vector<23x128xf32> to vector<1x128xf32>
    %15 = vector.extract_strided_slice %1 {offsets = [17, 0], sizes = [1, 128], strides = [1, 1]} : vector<23x128xf32> to vector<1x128xf32>
    %16 = vector.extract_strided_slice %1 {offsets = [18, 0], sizes = [1, 128], strides = [1, 1]} : vector<23x128xf32> to vector<1x128xf32>
    %17 = vector.extract_strided_slice %1 {offsets = [19, 0], sizes = [1, 128], strides = [1, 1]} : vector<23x128xf32> to vector<1x128xf32>
    %18 = vector.extract_strided_slice %2 {offsets = [0, 0], sizes = [8, 1], strides = [1, 1]} : vector<8x4xf32> to vector<8x1xf32>
    %19 = vector.extract_strided_slice %2 {offsets = [0, 2], sizes = [8, 1], strides = [1, 1]} : vector<8x4xf32> to vector<8x1xf32>
    %cst = arith.constant 5.000000e-01 : f32
    %20 = vector.broadcast %cst : f32 to vector<8x1xf32>
    %21 = arith.mulf %20, %19 : vector<8x1xf32>
    %22 = arith.subf %18, %21 : vector<8x1xf32>
    %23 = vector.extract_strided_slice %2 {offsets = [0, 1], sizes = [8, 1], strides = [1, 1]} : vector<8x4xf32> to vector<8x1xf32>
    %24 = vector.extract_strided_slice %2 {offsets = [0, 3], sizes = [8, 1], strides = [1, 1]} : vector<8x4xf32> to vector<8x1xf32>
    %cst_3 = arith.constant 5.000000e-01 : f32
    %25 = vector.broadcast %cst_3 : f32 to vector<8x1xf32>
    %26 = arith.mulf %25, %24 : vector<8x1xf32>
    %27 = arith.subf %23, %26 : vector<8x1xf32>
    %28 = vector.extract_strided_slice %2 {offsets = [0, 0], sizes = [8, 1], strides = [1, 1]} : vector<8x4xf32> to vector<8x1xf32>
    %29 = vector.extract_strided_slice %2 {offsets = [0, 2], sizes = [8, 1], strides = [1, 1]} : vector<8x4xf32> to vector<8x1xf32>
    %cst_4 = arith.constant 5.000000e-01 : f32
    %30 = vector.broadcast %cst_4 : f32 to vector<8x1xf32>
    %31 = arith.mulf %30, %29 : vector<8x1xf32>
    %32 = arith.addf %28, %31 : vector<8x1xf32>
    %33 = vector.extract_strided_slice %2 {offsets = [0, 1], sizes = [8, 1], strides = [1, 1]} : vector<8x4xf32> to vector<8x1xf32>
    %34 = vector.extract_strided_slice %2 {offsets = [0, 3], sizes = [8, 1], strides = [1, 1]} : vector<8x4xf32> to vector<8x1xf32>
    %cst_5 = arith.constant 5.000000e-01 : f32
    %35 = vector.broadcast %cst_5 : f32 to vector<8x1xf32>
    %36 = arith.mulf %35, %34 : vector<8x1xf32>
    %37 = arith.addf %33, %36 : vector<8x1xf32>
    %38 = arith.subf %32, %22 : vector<8x1xf32>
    %39 = arith.subf %37, %27 : vector<8x1xf32>
    %40 = arith.mulf %38, %39 : vector<8x1xf32>
    %41 = vector.broadcast %32 : vector<8x1xf32> to vector<8x128xf32>
    %42 = vector.broadcast %8 : vector<1x128xf32> to vector<8x128xf32>
    %43 = arith.minimumf %41, %42 : vector<8x128xf32>
    %44 = vector.broadcast %22 : vector<8x1xf32> to vector<8x128xf32>
    %45 = vector.broadcast %6 : vector<1x128xf32> to vector<8x128xf32>
    %46 = arith.maximumf %44, %45 : vector<8x128xf32>
    %47 = arith.subf %43, %46 : vector<8x128xf32>
    %cst_6 = arith.constant 0.000000e+00 : f32
    %48 = vector.broadcast %cst_6 : f32 to vector<8x128xf32>
    %49 = arith.maximumf %47, %48 : vector<8x128xf32>
    %50 = vector.broadcast %37 : vector<8x1xf32> to vector<8x128xf32>
    %51 = vector.broadcast %9 : vector<1x128xf32> to vector<8x128xf32>
    %52 = arith.minimumf %50, %51 : vector<8x128xf32>
    %53 = vector.broadcast %27 : vector<8x1xf32> to vector<8x128xf32>
    %54 = vector.broadcast %7 : vector<1x128xf32> to vector<8x128xf32>
    %55 = arith.maximumf %53, %54 : vector<8x128xf32>
    %56 = arith.subf %52, %55 : vector<8x128xf32>
    %cst_7 = arith.constant 0.000000e+00 : f32
    %57 = vector.broadcast %cst_7 : f32 to vector<8x128xf32>
    %58 = arith.maximumf %56, %57 : vector<8x128xf32>
    %59 = arith.mulf %49, %58 : vector<8x128xf32>
    %60 = vector.broadcast %40 : vector<8x1xf32> to vector<8x128xf32>
    %61 = vector.broadcast %10 : vector<1x128xf32> to vector<8x128xf32>
    %62 = arith.addf %60, %61 : vector<8x128xf32>
    %63 = arith.subf %62, %59 : vector<8x128xf32>
    %64 = vector.broadcast %32 : vector<8x1xf32> to vector<8x128xf32>
    %65 = vector.broadcast %8 : vector<1x128xf32> to vector<8x128xf32>
    %66 = arith.maximumf %64, %65 : vector<8x128xf32>
    %67 = vector.broadcast %22 : vector<8x1xf32> to vector<8x128xf32>
    %68 = vector.broadcast %6 : vector<1x128xf32> to vector<8x128xf32>
    %69 = arith.minimumf %67, %68 : vector<8x128xf32>
    %70 = arith.subf %66, %69 : vector<8x128xf32>
    %71 = vector.broadcast %37 : vector<8x1xf32> to vector<8x128xf32>
    %72 = vector.broadcast %9 : vector<1x128xf32> to vector<8x128xf32>
    %73 = arith.maximumf %71, %72 : vector<8x128xf32>
    %74 = vector.broadcast %27 : vector<8x1xf32> to vector<8x128xf32>
    %75 = vector.broadcast %7 : vector<1x128xf32> to vector<8x128xf32>
    %76 = arith.minimumf %74, %75 : vector<8x128xf32>
    %77 = arith.subf %73, %76 : vector<8x128xf32>
    %cst_8 = arith.constant 0.000000e+00 : f32
    %78 = vector.broadcast %cst_8 : f32 to vector<8x128xf32>
    %79 = arith.maximumf %70, %78 : vector<8x128xf32>
    %cst_9 = arith.constant 0.000000e+00 : f32
    %80 = vector.broadcast %cst_9 : f32 to vector<8x128xf32>
    %81 = arith.maximumf %77, %80 : vector<8x128xf32>
    %82 = arith.mulf %79, %81 : vector<8x128xf32>
    %83 = arith.subf %82, %63 : vector<8x128xf32>
    %84 = arith.mulf %63, %83 : vector<8x128xf32>
    %85 = arith.mulf %59, %82 : vector<8x128xf32>
    %86 = arith.subf %84, %85 : vector<8x128xf32>
    %87 = arith.mulf %63, %82 : vector<8x128xf32>
    %cst_10 = arith.constant 9.99999968E-21 : f32
    %88 = vector.broadcast %cst_10 : f32 to vector<8x128xf32>
    %89 = arith.addf %87, %88 : vector<8x128xf32>
    %90 = tpu.reciprocal %89 : vector<8x128xf32> -> vector<8x128xf32>
    %91 = arith.mulf %86, %90 : vector<8x128xf32>
    %92 = vector.extract_strided_slice %3 {offsets = [0, 0], sizes = [8, 1], strides = [1, 1]} : vector<8x4xf32> to vector<8x1xf32>
    %93 = vector.extract_strided_slice %3 {offsets = [0, 2], sizes = [8, 1], strides = [1, 1]} : vector<8x4xf32> to vector<8x1xf32>
    %cst_11 = arith.constant 5.000000e-01 : f32
    %94 = vector.broadcast %cst_11 : f32 to vector<8x1xf32>
    %95 = arith.mulf %94, %93 : vector<8x1xf32>
    %96 = arith.subf %92, %95 : vector<8x1xf32>
    %97 = vector.extract_strided_slice %3 {offsets = [0, 1], sizes = [8, 1], strides = [1, 1]} : vector<8x4xf32> to vector<8x1xf32>
    %98 = vector.extract_strided_slice %3 {offsets = [0, 3], sizes = [8, 1], strides = [1, 1]} : vector<8x4xf32> to vector<8x1xf32>
    %cst_12 = arith.constant 5.000000e-01 : f32
    %99 = vector.broadcast %cst_12 : f32 to vector<8x1xf32>
    %100 = arith.mulf %99, %98 : vector<8x1xf32>
    %101 = arith.subf %97, %100 : vector<8x1xf32>
    %102 = vector.extract_strided_slice %3 {offsets = [0, 0], sizes = [8, 1], strides = [1, 1]} : vector<8x4xf32> to vector<8x1xf32>
    %103 = vector.extract_strided_slice %3 {offsets = [0, 2], sizes = [8, 1], strides = [1, 1]} : vector<8x4xf32> to vector<8x1xf32>
    %cst_13 = arith.constant 5.000000e-01 : f32
    %104 = vector.broadcast %cst_13 : f32 to vector<8x1xf32>
    %105 = arith.mulf %104, %103 : vector<8x1xf32>
    %106 = arith.addf %102, %105 : vector<8x1xf32>
    %107 = vector.extract_strided_slice %3 {offsets = [0, 1], sizes = [8, 1], strides = [1, 1]} : vector<8x4xf32> to vector<8x1xf32>
    %108 = vector.extract_strided_slice %3 {offsets = [0, 3], sizes = [8, 1], strides = [1, 1]} : vector<8x4xf32> to vector<8x1xf32>
    %cst_14 = arith.constant 5.000000e-01 : f32
    %109 = vector.broadcast %cst_14 : f32 to vector<8x1xf32>
    %110 = arith.mulf %109, %108 : vector<8x1xf32>
    %111 = arith.addf %107, %110 : vector<8x1xf32>
    %112 = arith.subf %106, %96 : vector<8x1xf32>
    %113 = arith.subf %111, %101 : vector<8x1xf32>
    %114 = arith.mulf %112, %113 : vector<8x1xf32>
    %115 = vector.broadcast %106 : vector<8x1xf32> to vector<8x128xf32>
    %116 = vector.broadcast %13 : vector<1x128xf32> to vector<8x128xf32>
    %117 = arith.minimumf %115, %116 : vector<8x128xf32>
    %118 = vector.broadcast %96 : vector<8x1xf32> to vector<8x128xf32>
    %119 = vector.broadcast %11 : vector<1x128xf32> to vector<8x128xf32>
    %120 = arith.maximumf %118, %119 : vector<8x128xf32>
    %121 = arith.subf %117, %120 : vector<8x128xf32>
    %cst_15 = arith.constant 0.000000e+00 : f32
    %122 = vector.broadcast %cst_15 : f32 to vector<8x128xf32>
    %123 = arith.maximumf %121, %122 : vector<8x128xf32>
    %124 = vector.broadcast %111 : vector<8x1xf32> to vector<8x128xf32>
    %125 = vector.broadcast %14 : vector<1x128xf32> to vector<8x128xf32>
    %126 = arith.minimumf %124, %125 : vector<8x128xf32>
    %127 = vector.broadcast %101 : vector<8x1xf32> to vector<8x128xf32>
    %128 = vector.broadcast %12 : vector<1x128xf32> to vector<8x128xf32>
    %129 = arith.maximumf %127, %128 : vector<8x128xf32>
    %130 = arith.subf %126, %129 : vector<8x128xf32>
    %cst_16 = arith.constant 0.000000e+00 : f32
    %131 = vector.broadcast %cst_16 : f32 to vector<8x128xf32>
    %132 = arith.maximumf %130, %131 : vector<8x128xf32>
    %133 = arith.mulf %123, %132 : vector<8x128xf32>
    %134 = vector.broadcast %114 : vector<8x1xf32> to vector<8x128xf32>
    %135 = vector.broadcast %15 : vector<1x128xf32> to vector<8x128xf32>
    %136 = arith.addf %134, %135 : vector<8x128xf32>
    %137 = arith.subf %136, %133 : vector<8x128xf32>
    %138 = vector.broadcast %106 : vector<8x1xf32> to vector<8x128xf32>
    %139 = vector.broadcast %13 : vector<1x128xf32> to vector<8x128xf32>
    %140 = arith.maximumf %138, %139 : vector<8x128xf32>
    %141 = vector.broadcast %96 : vector<8x1xf32> to vector<8x128xf32>
    %142 = vector.broadcast %11 : vector<1x128xf32> to vector<8x128xf32>
    %143 = arith.minimumf %141, %142 : vector<8x128xf32>
    %144 = arith.subf %140, %143 : vector<8x128xf32>
    %145 = vector.broadcast %111 : vector<8x1xf32> to vector<8x128xf32>
    %146 = vector.broadcast %14 : vector<1x128xf32> to vector<8x128xf32>
    %147 = arith.maximumf %145, %146 : vector<8x128xf32>
    %148 = vector.broadcast %101 : vector<8x1xf32> to vector<8x128xf32>
    %149 = vector.broadcast %12 : vector<1x128xf32> to vector<8x128xf32>
    %150 = arith.minimumf %148, %149 : vector<8x128xf32>
    %151 = arith.subf %147, %150 : vector<8x128xf32>
    %cst_17 = arith.constant 0.000000e+00 : f32
    %152 = vector.broadcast %cst_17 : f32 to vector<8x128xf32>
    %153 = arith.maximumf %144, %152 : vector<8x128xf32>
    %cst_18 = arith.constant 0.000000e+00 : f32
    %154 = vector.broadcast %cst_18 : f32 to vector<8x128xf32>
    %155 = arith.maximumf %151, %154 : vector<8x128xf32>
    %156 = arith.mulf %153, %155 : vector<8x128xf32>
    %157 = arith.subf %156, %137 : vector<8x128xf32>
    %158 = arith.mulf %137, %157 : vector<8x128xf32>
    %159 = arith.mulf %133, %156 : vector<8x128xf32>
    %160 = arith.subf %158, %159 : vector<8x128xf32>
    %161 = arith.mulf %137, %156 : vector<8x128xf32>
    %cst_19 = arith.constant 9.99999968E-21 : f32
    %162 = vector.broadcast %cst_19 : f32 to vector<8x128xf32>
    %163 = arith.addf %161, %162 : vector<8x128xf32>
    %164 = tpu.reciprocal %163 : vector<8x128xf32> -> vector<8x128xf32>
    %165 = arith.mulf %160, %164 : vector<8x128xf32>
    %166 = vector.broadcast %17 : vector<1x128xf32> to vector<8x128xf32>
    %167 = arith.mulf %91, %166 : vector<8x128xf32>
    %168 = arith.addf %165, %167 : vector<8x128xf32>
    %169 = arith.maximumf %91, %168 : vector<8x128xf32>
    %170 = vector.extract_strided_slice %2 {offsets = [0, 0], sizes = [8, 1], strides = [1, 1]} : vector<8x4xf32> to vector<8x1xf32>
    %171 = vector.extract_strided_slice %4 {offsets = [0, 0], sizes = [1, 128], strides = [1, 1]} : vector<4x128xf32> to vector<1x128xf32>
    %172 = vector.broadcast %170 : vector<8x1xf32> to vector<8x128xf32>
    %173 = vector.broadcast %171 : vector<1x128xf32> to vector<8x128xf32>
    %174 = arith.subf %172, %173 : vector<8x128xf32>
    %175 = math.absf %174 : vector<8x128xf32>
    %176 = vector.extract_strided_slice %2 {offsets = [0, 1], sizes = [8, 1], strides = [1, 1]} : vector<8x4xf32> to vector<8x1xf32>
    %177 = vector.extract_strided_slice %4 {offsets = [1, 0], sizes = [1, 128], strides = [1, 1]} : vector<4x128xf32> to vector<1x128xf32>
    %178 = vector.broadcast %176 : vector<8x1xf32> to vector<8x128xf32>
    %179 = vector.broadcast %177 : vector<1x128xf32> to vector<8x128xf32>
    %180 = arith.subf %178, %179 : vector<8x128xf32>
    %181 = math.absf %180 : vector<8x128xf32>
    %182 = arith.addf %175, %181 : vector<8x128xf32>
    %183 = vector.extract_strided_slice %2 {offsets = [0, 2], sizes = [8, 1], strides = [1, 1]} : vector<8x4xf32> to vector<8x1xf32>
    %184 = vector.extract_strided_slice %4 {offsets = [2, 0], sizes = [1, 128], strides = [1, 1]} : vector<4x128xf32> to vector<1x128xf32>
    %185 = vector.broadcast %183 : vector<8x1xf32> to vector<8x128xf32>
    %186 = vector.broadcast %184 : vector<1x128xf32> to vector<8x128xf32>
    %187 = arith.subf %185, %186 : vector<8x128xf32>
    %188 = math.absf %187 : vector<8x128xf32>
    %189 = arith.addf %182, %188 : vector<8x128xf32>
    %190 = vector.extract_strided_slice %2 {offsets = [0, 3], sizes = [8, 1], strides = [1, 1]} : vector<8x4xf32> to vector<8x1xf32>
    %191 = vector.extract_strided_slice %4 {offsets = [3, 0], sizes = [1, 128], strides = [1, 1]} : vector<4x128xf32> to vector<1x128xf32>
    %192 = vector.broadcast %190 : vector<8x1xf32> to vector<8x128xf32>
    %193 = vector.broadcast %191 : vector<1x128xf32> to vector<8x128xf32>
    %194 = arith.subf %192, %193 : vector<8x128xf32>
    %195 = math.absf %194 : vector<8x128xf32>
    %196 = arith.addf %189, %195 : vector<8x128xf32>
    %197 = vector.extract_strided_slice %3 {offsets = [0, 0], sizes = [8, 1], strides = [1, 1]} : vector<8x4xf32> to vector<8x1xf32>
    %198 = vector.extract_strided_slice %5 {offsets = [0, 0], sizes = [1, 128], strides = [1, 1]} : vector<4x128xf32> to vector<1x128xf32>
    %199 = vector.broadcast %197 : vector<8x1xf32> to vector<8x128xf32>
    %200 = vector.broadcast %198 : vector<1x128xf32> to vector<8x128xf32>
    %201 = arith.subf %199, %200 : vector<8x128xf32>
    %202 = math.absf %201 : vector<8x128xf32>
    %203 = vector.extract_strided_slice %3 {offsets = [0, 1], sizes = [8, 1], strides = [1, 1]} : vector<8x4xf32> to vector<8x1xf32>
    %204 = vector.extract_strided_slice %5 {offsets = [1, 0], sizes = [1, 128], strides = [1, 1]} : vector<4x128xf32> to vector<1x128xf32>
    %205 = vector.broadcast %203 : vector<8x1xf32> to vector<8x128xf32>
    %206 = vector.broadcast %204 : vector<1x128xf32> to vector<8x128xf32>
    %207 = arith.subf %205, %206 : vector<8x128xf32>
    %208 = math.absf %207 : vector<8x128xf32>
    %209 = arith.addf %202, %208 : vector<8x128xf32>
    %210 = vector.extract_strided_slice %3 {offsets = [0, 2], sizes = [8, 1], strides = [1, 1]} : vector<8x4xf32> to vector<8x1xf32>
    %211 = vector.extract_strided_slice %5 {offsets = [2, 0], sizes = [1, 128], strides = [1, 1]} : vector<4x128xf32> to vector<1x128xf32>
    %212 = vector.broadcast %210 : vector<8x1xf32> to vector<8x128xf32>
    %213 = vector.broadcast %211 : vector<1x128xf32> to vector<8x128xf32>
    %214 = arith.subf %212, %213 : vector<8x128xf32>
    %215 = math.absf %214 : vector<8x128xf32>
    %216 = arith.addf %209, %215 : vector<8x128xf32>
    %217 = vector.extract_strided_slice %3 {offsets = [0, 3], sizes = [8, 1], strides = [1, 1]} : vector<8x4xf32> to vector<8x1xf32>
    %218 = vector.extract_strided_slice %5 {offsets = [3, 0], sizes = [1, 128], strides = [1, 1]} : vector<4x128xf32> to vector<1x128xf32>
    %219 = vector.broadcast %217 : vector<8x1xf32> to vector<8x128xf32>
    %220 = vector.broadcast %218 : vector<1x128xf32> to vector<8x128xf32>
    %221 = arith.subf %219, %220 : vector<8x128xf32>
    %222 = math.absf %221 : vector<8x128xf32>
    %223 = arith.addf %216, %222 : vector<8x128xf32>
    %224 = vector.broadcast %16 : vector<1x128xf32> to vector<8x128xf32>
    %225 = arith.mulf %223, %224 : vector<8x128xf32>
    %226 = arith.maximumf %196, %225 : vector<8x128xf32>
    %227 = arith.addf %169, %226 : vector<8x128xf32>
    %228 = vector.extract_strided_slice %0 {offsets = [0, 0], sizes = [8, 12], strides = [1, 1]} : vector<8x36xf32> to vector<8x12xf32>
    %cst_20 = arith.constant dense<0xFF800000> : vector<8xf32>
    %229 = vector.multi_reduction <maximumf>, %228, %cst_20 [1] : vector<8x12xf32> to vector<8xf32>
    %230 = vector.shape_cast %229 : vector<8xf32> to vector<8x1xf32>
    %231 = vector.broadcast %230 : vector<8x1xf32> to vector<8x12xf32>
    %232 = arith.subf %228, %231 : vector<8x12xf32>
    %233 = math.exp %232 : vector<8x12xf32>
    %cst_21 = arith.constant dense<0.000000e+00> : vector<8xf32>
    %234 = vector.multi_reduction <add>, %233, %cst_21 [1] : vector<8x12xf32> to vector<8xf32>
    %235 = vector.shape_cast %234 : vector<8xf32> to vector<8x1xf32>
    %236 = tpu.reciprocal %235 : vector<8x1xf32> -> vector<8x1xf32>
    %237 = vector.broadcast %236 : vector<8x1xf32> to vector<8x12xf32>
    %238 = arith.mulf %233, %237 : vector<8x12xf32>
    %c0_22 = arith.constant 0 : index
    %c0_23 = arith.constant 0 : index
    %239 = vector.load %arg2[%c0_22, %c0_23] : memref<12x128xf32, #tpu.memory_space<vmem>>, vector<12x128xf32>
    %cst_24 = arith.constant dense<0.000000e+00> : vector<8x128xf32>
    %240 = tpu.matmul %238, %239, %cst_24 {dimension_numbers = #tpu.dot_dimension_numbers<[1], [0], [0], [1], [0, 0, 1, 1], [], []>} : vector<8x12xf32>, vector<12x128xf32>, vector<8x128xf32> -> vector<8x128xf32>
    %241 = arith.subf %227, %240 : vector<8x128xf32>
    %242 = vector.extract_strided_slice %0 {offsets = [0, 12], sizes = [8, 16], strides = [1, 1]} : vector<8x36xf32> to vector<8x16xf32>
    %243 = arith.negf %242 : vector<8x16xf32>
    %244 = math.exp %243 : vector<8x16xf32>
    %cst_25 = arith.constant 1.000000e+00 : f32
    %245 = vector.broadcast %cst_25 : f32 to vector<8x16xf32>
    %246 = arith.addf %245, %244 : vector<8x16xf32>
    %247 = arith.divf %245, %246 : vector<8x16xf32>
    %c0_26 = arith.constant 0 : index
    %c0_27 = arith.constant 0 : index
    %248 = vector.load %arg4[%c0_26, %c0_27] : memref<16x128xf32, #tpu.memory_space<vmem>>, vector<16x128xf32>
    %249 = vector.extract_strided_slice %1 {offsets = [20, 0], sizes = [1, 128], strides = [1, 1]} : vector<23x128xf32> to vector<1x128xf32>
    %250 = vector.extract_strided_slice %1 {offsets = [21, 0], sizes = [1, 128], strides = [1, 1]} : vector<23x128xf32> to vector<1x128xf32>
    %251 = vector.extract_strided_slice %1 {offsets = [22, 0], sizes = [1, 128], strides = [1, 1]} : vector<23x128xf32> to vector<1x128xf32>
    %cst_28 = arith.constant dense<0.000000e+00> : vector<8x128xf32>
    %252 = tpu.matmul %247, %248, %cst_28 {dimension_numbers = #tpu.dot_dimension_numbers<[1], [0], [0], [1], [0, 0, 1, 1], [], []>} : vector<8x16xf32>, vector<16x128xf32>, vector<8x128xf32> -> vector<8x128xf32>
    %cst_29 = arith.constant dense<0.000000e+00> : vector<8xf32>
    %253 = vector.multi_reduction <add>, %247, %cst_29 [1] : vector<8x16xf32> to vector<8xf32>
    %254 = vector.shape_cast %253 : vector<8xf32> to vector<8x1xf32>
    %cst_30 = arith.constant 1.600000e+01 : f32
    %255 = vector.broadcast %cst_30 : f32 to vector<8x1xf32>
    %256 = arith.subf %255, %254 : vector<8x1xf32>
    %257 = vector.broadcast %256 : vector<8x1xf32> to vector<8x128xf32>
    %258 = vector.broadcast %249 : vector<1x128xf32> to vector<8x128xf32>
    %259 = arith.subf %257, %258 : vector<8x128xf32>
    %260 = arith.addf %259, %252 : vector<8x128xf32>
    %261 = vector.broadcast %250 : vector<1x128xf32> to vector<8x128xf32>
    %262 = arith.mulf %252, %261 : vector<8x128xf32>
    %263 = vector.broadcast %251 : vector<1x128xf32> to vector<8x128xf32>
    %264 = arith.mulf %260, %263 : vector<8x128xf32>
    %265 = arith.addf %262, %264 : vector<8x128xf32>
    %cst_31 = arith.constant 5.000000e-01 : f32
    %266 = vector.broadcast %cst_31 : f32 to vector<8x128xf32>
    %267 = arith.mulf %266, %265 : vector<8x128xf32>
    %268 = arith.subf %241, %267 : vector<8x128xf32>
    %c0_32 = arith.constant 0 : index
    %c0_33 = arith.constant 0 : index
    %269 = vector.load %arg5[%c0_32, %c0_33] : memref<8x128xf32, #tpu.memory_space<vmem>>, vector<8x128xf32>
    tpu.vector_store %arg5[%c0_32, %c0_33], %268 {strides = array<i32>} : memref<8x128xf32, #tpu.memory_space<vmem>>, vector<8x128xf32>,
    return
  }
  func.func @transform_0(%arg0: i32) -> (i32, i32) {
    %c0_i32 = arith.constant 0 : i32
    %c0_i32_0 = arith.constant 0 : i32
    return %arg0, %c0_i32 : i32, i32
  }
  func.func @transform_1(%arg0: i32) -> (i32, i32) {
    %c0_i32 = arith.constant 0 : i32
    %c0_i32_0 = arith.constant 0 : i32
    %c0_i32_1 = arith.constant 0 : i32
    return %c0_i32, %c0_i32_0 : i32, i32
  }
  func.func @transform_2(%arg0: i32) -> (i32, i32) {
    %c0_i32 = arith.constant 0 : i32
    %c0_i32_0 = arith.constant 0 : i32
    %c0_i32_1 = arith.constant 0 : i32
    return %c0_i32, %c0_i32_0 : i32, i32
  }
  func.func @transform_3(%arg0: i32) -> (i32, i32) {
    %c0_i32 = arith.constant 0 : i32
    %c0_i32_0 = arith.constant 0 : i32
    %c0_i32_1 = arith.constant 0 : i32
    return %c0_i32, %c0_i32_0 : i32, i32
  }
  func.func @transform_4(%arg0: i32) -> (i32, i32) {
    %c0_i32 = arith.constant 0 : i32
    %c0_i32_0 = arith.constant 0 : i32
    return %arg0, %c0_i32 : i32, i32
  }
}

</mosaic_0001>

<llo_original>
// kernel: fn.1
$region0: #{fn.1}
  #allocation0 [shape = 'u32[]', space=smem, size = 0x4, offset = 0x4, fixed_abs, tag = 'smem constant byte address 0x4 - core index']
  #allocation1 [shape = 'u32[144,128]{1,0:T(1,128)}', space=vmem, size = 0x12000, scoped, tag = 'internal scratch']
  %s0 = inlined_call_operand.hbm [shape: f32[16,36], index: 0, kind: input, shape index: {}]
  %s1 = inlined_call_operand.hbm [shape: f32[12,128], index: 1, kind: input, shape index: {}]
  %s2 = inlined_call_operand.hbm [shape: f32[23,128], index: 2, kind: input, shape index: {}]
  %s3 = inlined_call_operand.hbm [shape: f32[16,128], index: 3, kind: input, shape index: {}]
  %s4 = inlined_call_operand.vmem [shape: f32[16,128], index: 4, kind: output, shape index: {}]
  %s5 = sld [smem:[#allocation0]]
  $region65: #{fn.1} parent=0
    _
  %s7 = ssub.s32 1, %s5
  %s8 = scalar_select 0, %s7, %s5
  $region1: #{fn.1} parent=0
    #allocation2 [shape = 'u8[8192]{0}', space=vmem, size = 0x2000, scoped, tag = 'input window, operand 0']
    #allocation3 [shape = 's32[2]{0}', space=sflag, size = 0x8, scoped, tag = 'scoped memory for fn.1']
    #allocation4 [shape = 'u8[8192]{0}', space=vmem, size = 0x2000, scoped, tag = 'input window, operand 1, single buffered']
    #allocation5 [shape = 's32[1]{0}', space=sflag, size = 0x4, scoped, tag = 'scoped memory for fn.1']
    #allocation6 [shape = 'u8[12288]{0}', space=vmem, size = 0x3000, scoped, tag = 'input window, operand 2, single buffered']
    #allocation7 [shape = 'u8[8192]{0}', space=vmem, size = 0x2000, scoped, tag = 'input window, operand 3, single buffered']
    #allocation8 [shape = 's32[1]{0}', space=sflag, size = 0x4, scoped, tag = 'scoped memory for fn.1']
    %9 = vsyncpa [#allocation3], 0
    %s10 = scalar_lea.sflag [#allocation3], 1
    %11 = vsyncpa %s10, 0
    %12 = vsyncpa [#allocation5], 0
    %13 = vsyncpa [#allocation8], 0
    loop: start=0, step=1, limit=4
    $region2: #{fn.1} parent=1 // loop_pre_header
      _
    $region3: #{fn.1} parent=1 // loop_header
      %s15 = sphi 0, %s19
      %p16 = scmp.ge.s32.totalorder %s15, 4
      %s25 = sphi 0, %s27
      %s28 = sphi 0, %s25
      %s29 = sphi 0, %s28
      %s45 = sphi 0, %s29
      %s49 = sphi 0, %s49
      %s51 = sphi 0, %s49
      %s52 = sphi 0, %s51
      %s66 = sphi 0, %s52
      %s70 = sphi 0, %s70
      %s72 = sphi 0, %s70
      %s73 = sphi 0, %s72
      %s87 = sphi 0, %s73
      %s91 = sphi 0, %s91
      %s93 = sphi 0, %s91
      %s94 = sphi 0, %s93
      %s108 = sphi 0, %s94
      %s114 = sphi 0, %s116
      %s117 = sphi 0, %s114
      %s118 = sphi 0, %s117
      %s134 = sphi 0, %s118
    $region4: #{fn.1} parent=1 // loop_header_branch
      %18 = sbr.rel (%p16) target = $region8
    $region5: #{fn.1} parent=1 // loop_body
      %s20 = ssub.s32 %s15, 1
      %s21 = ssub.s32 %s15, 2
      %s22 = sadd.s32 %s15, 1
      %s23 = ssub.s32 %s15, %s22
      %p24 = scmp.eq.s32.totalorder %s23, 0
      %s26 = sadd.s32 %s25, 1
      %s27 = scalar_select %p24, %s25, %s26
      %p30 = pneg %p24
      %p31 = scmp.eq.s32.totalorder %s15, 1
      %p32 = por %p30, %p31
      %p33 = scmp.ne.s32.totalorder %s25, %s28
      %p34 = scmp.eq.s32.totalorder %s15, 0
      %p35 = por %p33, %p34
      %p36 = scmp.ne.s32.totalorder %s25, %s28
      %p37 = scmp.eq.s32.totalorder %s20, 1
      %p38 = por %p36, %p37
      %p39 = scmp.ne.s32.totalorder %s28, %s29
      %p40 = scmp.eq.s32.totalorder %s20, 0
      %p41 = por %p39, %p40
      %p42 = scmp.ne.s32.totalorder %s28, %s29
      %p43 = scmp.eq.s32.totalorder %s21, 1
      %p44 = por %p42, %p43
      %p46 = scmp.ne.s32.totalorder %s29, %s45
      %p47 = scmp.eq.s32.totalorder %s21, 0
      %p48 = por %p46, %p47
      %s50 = sadd.s32 %s49, 1
      %p53 = scmp.eq.s32.totalorder %s15, 1
      %p54 = scmp.ne.s32.totalorder %s49, %s51
      %p55 = scmp.eq.s32.totalorder %s15, 0
      %p56 = por %p54, %p55
      %p57 = scmp.ne.s32.totalorder %s49, %s51
      %p58 = scmp.eq.s32.totalorder %s20, 1
      %p59 = por %p57, %p58
      %p60 = scmp.ne.s32.totalorder %s51, %s52
      %p61 = scmp.eq.s32.totalorder %s20, 0
      %p62 = por %p60, %p61
      %p63 = scmp.ne.s32.totalorder %s51, %s52
      %p64 = scmp.eq.s32.totalorder %s21, 1
      %p65 = por %p63, %p64
      %p67 = scmp.ne.s32.totalorder %s52, %s66
      %p68 = scmp.eq.s32.totalorder %s21, 0
      %p69 = por %p67, %p68
      %s71 = sadd.s32 %s70, 1
      %p74 = scmp.eq.s32.totalorder %s15, 1
      %p75 = scmp.ne.s32.totalorder %s70, %s72
      %p76 = scmp.eq.s32.totalorder %s15, 0
      %p77 = por %p75, %p76
      %p78 = scmp.ne.s32.totalorder %s70, %s72
      %p79 = scmp.eq.s32.totalorder %s20, 1
      %p80 = por %p78, %p79
      %p81 = scmp.ne.s32.totalorder %s72, %s73
      %p82 = scmp.eq.s32.totalorder %s20, 0
      %p83 = por %p81, %p82
      %p84 = scmp.ne.s32.totalorder %s72, %s73
      %p85 = scmp.eq.s32.totalorder %s21, 1
      %p86 = por %p84, %p85
      %p88 = scmp.ne.s32.totalorder %s73, %s87
      %p89 = scmp.eq.s32.totalorder %s21, 0
      %p90 = por %p88, %p89
      %s92 = sadd.s32 %s91, 1
      %p95 = scmp.eq.s32.totalorder %s15, 1
      %p96 = scmp.ne.s32.totalorder %s91, %s93
      %p97 = scmp.eq.s32.totalorder %s15, 0
      %p98 = por %p96, %p97
      %p99 = scmp.ne.s32.totalorder %s91, %s93
      %p100 = scmp.eq.s32.totalorder %s20, 1
      %p101 = por %p99, %p100
      %p102 = scmp.ne.s32.totalorder %s93, %s94
      %p103 = scmp.eq.s32.totalorder %s20, 0
      %p104 = por %p102, %p103
      %p105 = scmp.ne.s32.totalorder %s93, %s94
      %p106 = scmp.eq.s32.totalorder %s21, 1
      %p107 = por %p105, %p106
      %p109 = scmp.ne.s32.totalorder %s94, %s108
      %p110 = scmp.eq.s32.totalorder %s21, 0
      %p111 = por %p109, %p110
      %s112 = ssub.s32 %s15, %s22
      %p113 = scmp.eq.s32.totalorder %s112, 0
      %s115 = sadd.s32 %s114, 1
      %s116 = scalar_select %p113, %s114, %s115
      %p119 = pneg %p113
      %p120 = scmp.eq.s32.totalorder %s15, 1
      %p121 = por %p119, %p120
      %p122 = scmp.ne.s32.totalorder %s114, %s117
      %p123 = scmp.eq.s32.totalorder %s15, 0
      %p124 = por %p122, %p123
      %p125 = scmp.ne.s32.totalorder %s114, %s117
      %p126 = scmp.eq.s32.totalorder %s20, 1
      %p127 = por %p125, %p126
      %p128 = scmp.ne.s32.totalorder %s117, %s118
      %p129 = scmp.eq.s32.totalorder %s20, 0
      %p130 = por %p128, %p129
      %p131 = scmp.ne.s32.totalorder %s117, %s118
      %p132 = scmp.eq.s32.totalorder %s21, 1
      %p133 = por %p131, %p132
      %p135 = scmp.ne.s32.totalorder %s118, %s134
      %p136 = scmp.eq.s32.totalorder %s21, 0
      %p137 = por %p135, %p136
      %p138 = scmp.le.s32.totalorder 1, %s15
      %p139 = scmp.lt.s32.totalorder %s15, 3
      %p140 = pnand %p138, %p139
      %p141 = pneg %p140
      // Predicated region
      $region9: #{fn.1} parent=5 // pred_check
        _
      $region10: #{fn.1} parent=5 // pred_check_branch
        %143 = sbr.rel (%p140) target = $region12
      $region11: #{fn.1} parent=5 // pred_region
        %s144 = ssub.s32 %s15, 1
        // Predicated region
        $region13: #{fn.1} parent=11 // pred_check
          %p145 = pneg %p62
        $region14: #{fn.1} parent=11 // pred_check_branch
          %147 = sbr.rel (%p145) target = $region16
        $region15: #{fn.1} parent=11 // pred_region
          %s149 = ssub.s32 256, 256
          %150 = vsyncadd [#allocation5], %s149
          %s151 = sshll.u32 [#allocation4], 4
          %s152 = int_to_ptr.vmem [resolvable:$true] %s151
          %157 = dma.hbm_to_vmem [thread:$0]  %s1, 256, %s152, [#allocation5], 128, 128, 8
        $region16: #{fn.1} parent=11 // pred_fallthru
          _
        // Predicated region
        $region17: #{fn.1} parent=11 // pred_check
          %p158 = pneg %p83
        $region18: #{fn.1} parent=11 // pred_check_branch
          %160 = sbr.rel (%p158) target = $region20
        $region19: #{fn.1} parent=11 // pred_region
          %s162 = ssub.s32 384, 384
          %163 = vsyncadd [#allocation5], %s162
          %s164 = sshll.u32 [#allocation6], 4
          %s165 = int_to_ptr.vmem [resolvable:$true] %s164
          %170 = dma.hbm_to_vmem [thread:$0]  %s2, 384, %s165, [#allocation5], 128, 128, 8
        $region20: #{fn.1} parent=11 // pred_fallthru
          _
        // Predicated region
        $region21: #{fn.1} parent=11 // pred_check
          %p171 = pneg %p104
        $region22: #{fn.1} parent=11 // pred_check_branch
          %173 = sbr.rel (%p171) target = $region24
        $region23: #{fn.1} parent=11 // pred_region
          %s175 = ssub.s32 256, 256
          %176 = vsyncadd [#allocation8], %s175
          %s177 = sshll.u32 [#allocation7], 4
          %s178 = int_to_ptr.vmem [resolvable:$true] %s177
          %183 = dma.hbm_to_vmem [thread:$0]  %s3, 256, %s178, [#allocation8], 128, 128, 8
        $region24: #{fn.1} parent=11 // pred_fallthru
          _
      $region12: #{fn.1} parent=5 // pred_fallthru
        _
      %p184 = scmp.lt.s32.totalorder %s15, 2
      // Predicated region
      $region25: #{fn.1} parent=5 // pred_check
        %p185 = pneg %p184
      $region26: #{fn.1} parent=5 // pred_check_branch
        %187 = sbr.rel (%p185) target = $region28
      $region27: #{fn.1} parent=5 // pred_region
        // Predicated region
        $region29: #{fn.1} parent=27 // pred_check
          %p188 = pneg %p35
        $region30: #{fn.1} parent=27 // pred_check_branch
          %190 = sbr.rel (%p188) target = $region32
        $region31: #{fn.1} parent=27 // pred_region
          %s191 = sand.u32 %s25, 1
          %s192 = scalar_lea.sflag [#allocation3], %s191
          %s193 = sand.u32 %s25, 1
          %s194 = smul.addr %s193, 8
          %s195 = scalar_lea.vmem [#allocation2], %s194
          %s197 = ssub.s32 128, 128
          %198 = vsyncadd %s192, %s197
          %s199 = smul.addr %s15, 128
          %s200 = scalar_lea.hbm %s0, %s199
          %s202 = sshll.u32 %s195, 4
          %s203 = int_to_ptr.vmem [resolvable:$true] %s202
          %205 = dma.hbm_to_vmem [thread:$0]  %s200, 128, %s203, %s192
        $region32: #{fn.1} parent=27 // pred_fallthru
          _
      $region28: #{fn.1} parent=5 // pred_fallthru
        _
      %p206 = scmp.le.s32.totalorder 1, %s15
      %p207 = scmp.lt.s32.totalorder %s15, 3
      %p208 = pnand %p206, %p207
      %p209 = pneg %p208
      // Predicated region
      $region33: #{fn.1} parent=5 // pred_check
        _
      $region34: #{fn.1} parent=5 // pred_check_branch
        %211 = sbr.rel (%p208) target = $region36
      $region35: #{fn.1} parent=5 // pred_region
        %s212 = ssub.s32 %s15, 1
        %s213 = sand.u32 %s28, 1
        %s214 = scalar_lea.sflag [#allocation3], %s213
        %s215 = sand.u32 %s28, 1
        %s216 = smul.addr %s215, 8
        %s217 = scalar_lea.vmem [#allocation2], %s216
        // Predicated region
        $region37: #{fn.1} parent=35 // pred_check
          %p218 = pneg %p41
        $region38: #{fn.1} parent=35 // pred_check_branch
          %220 = sbr.rel (%p218) target = $region40
        $region39: #{fn.1} parent=35 // pred_region
          %221 = dma.done %s214, 128
        $region40: #{fn.1} parent=35 // pred_fallthru
          _
        // Predicated region
        $region41: #{fn.1} parent=35 // pred_check
          %p222 = pneg %p62
        $region42: #{fn.1} parent=35 // pred_check_branch
          %224 = sbr.rel (%p222) target = $region44
        $region43: #{fn.1} parent=35 // pred_region
          %225 = dma.done [#allocation5], 256
        $region44: #{fn.1} parent=35 // pred_fallthru
          _
        // Predicated region
        $region45: #{fn.1} parent=35 // pred_check
          %p226 = pneg %p83
        $region46: #{fn.1} parent=35 // pred_check_branch
          %228 = sbr.rel (%p226) target = $region48
        $region47: #{fn.1} parent=35 // pred_region
          %229 = dma.done [#allocation5], 384
        $region48: #{fn.1} parent=35 // pred_fallthru
          _
        // Predicated region
        $region49: #{fn.1} parent=35 // pred_check
          %p230 = pneg %p104
        $region50: #{fn.1} parent=35 // pred_check_branch
          %232 = sbr.rel (%p230) target = $region52
        $region51: #{fn.1} parent=35 // pred_region
          %233 = dma.done [#allocation8], 256
        $region52: #{fn.1} parent=35 // pred_fallthru
          _
        %s234 = sand.u32 %s28, 1
        %s235 = scalar_lea.sflag [#allocation3], %s234
        %s236 = sand.u32 %s28, 1
        %s237 = smul.addr %s236, 8
        %s238 = scalar_lea.vmem [#allocation2], %s237
        %p239 = pneg %p41
        %p240 = pneg %p38
        %p241 = pneg %p62
        %p242 = pneg %p59
        %p243 = pneg %p83
        %p244 = pneg %p80
        %p245 = pneg %p104
        %p246 = pneg %p101
        %p247 = pneg %p130
        %p248 = pneg %p127
        %p249 = scmp.lt.s32.totalorder %s20, 1
        %s250 = scalar_select %p249, %s20, 1
        %s251 = smul.addr %s250, 8
        %s252 = scalar_lea.vmem %s4, %s251
        %p253 = scmp.lt.s32.totalorder %s20, 1
        %s254 = scalar_select %p253, %s20, 1
        %s255 = smul.addr %s254, 8
        %s256 = scalar_lea.vmem %s4, %s255
        %v257 = vld [vmem:[%s217] sm:$0xff]
        %v258 = vld [vmem:[#allocation6] sm:$0xff]
        %v259 = vld [vmem:[#allocation6 + $0x8] sm:$0xff]
        %v260 = vld [vmem:[#allocation6 + $0x10] sm:$0x7f]
        %v261 = vmul.f32 %v257, 0.5
        %263 = vrot.lane.b32.xlu0 %v261, 126
        %v264 = vpop.permute.xlu0 %263
        %v266 = vsub.f32 %v257, %v264
        %v267 = vadd.f32 %v257, %v264
        %v268 = vsub.f32 %v267, %v266
        %270 = vrot.lane.b32.xlu0 %v268, 127
        %v271 = vpop.permute.xlu0 %270
        %v273 = vmul.f32 %v268, %v271
        %275 = vset.pattern.permute.xlu0 28
        %276 = vperm.xlu0 %275, %v267
        %v277 = vpop.permute.xlu0 %276
        %v279 = vlaneseq
        %v280 = vshrl.u32 %v279, 7
        %v281 = vsub.s32 2, %v280
        %v282 = vrot.slane %v259, %v281
        %v283 = vmin.f32 %v277, %v282
        %285 = vset.pattern.permute.xlu0 28
        %286 = vperm.xlu0 %285, %v266
        %v287 = vpop.permute.xlu0 %286
        %v289 = vlaneseq
        %v290 = vshrl.u32 %v289, 7
        %v291 = vsub.s32 0, %v290
        %v292 = vrot.slane %v259, %v291
        %v293 = vmax.f32 %v287, %v292
        %v294 = vsub.f32 %v283, %v293
        %v295 = vmax.f32 %v294, 0.0
        %296 = vset.pattern.permute.xlu0 29
        %297 = vperm.xlu0 %296, %v267
        %v298 = vpop.permute.xlu0 %297
        %v300 = vlaneseq
        %v301 = vshrl.u32 %v300, 7
        %v302 = vsub.s32 3, %v301
        %v303 = vrot.slane %v259, %v302
        %v304 = vmin.f32 %v298, %v303
        %305 = vset.pattern.permute.xlu0 29
        %306 = vperm.xlu0 %305, %v266
        %v307 = vpop.permute.xlu0 %306
        %v309 = vlaneseq
        %v310 = vshrl.u32 %v309, 7
        %v311 = vsub.s32 1, %v310
        %v312 = vrot.slane %v259, %v311
        %v313 = vmax.f32 %v307, %v312
        %v314 = vsub.f32 %v304, %v313
        %v315 = vmax.f32 %v314, 0.0
        %v316 = vmul.f32 %v295, %v315
        %318 = vset.pattern.permute.xlu0 28
        %319 = vperm.xlu0 %318, %v273
        %v320 = vpop.permute.xlu0 %319
        %v322 = vlaneseq
        %v323 = vshrl.u32 %v322, 7
        %v324 = vsub.s32 4, %v323
        %v325 = vrot.slane %v259, %v324
        %v326 = vadd.f32 %v320, %v325
        %v327 = vsub.f32 %v326, %v316
        %v328 = vmax.f32 %v277, %v282
        %v329 = vmin.f32 %v287, %v292
        %v330 = vsub.f32 %v328, %v329
        %v331 = vmax.f32 %v298, %v303
        %v332 = vmin.f32 %v307, %v312
        %v333 = vsub.f32 %v331, %v332
        %v334 = vmax.f32 %v330, 0.0
        %v335 = vmax.f32 %v333, 0.0
        %v336 = vmul.f32 %v334, %v335
        %v337 = vsub.f32 %v336, %v327
        %v338 = vmul.f32 %v327, %v337
        %v339 = vmul.f32 %v316, %v336
        %v340 = vsub.f32 %v338, %v339
        %v341 = vmul.f32 %v327, %v336
        %v342 = vadd.f32 %v341, 1e-20
        %v343 = vrcp.pop %v342
        %v344 = vmul.f32 %v340, %v343
        %345 = vset.pattern.permute.xlu0 32
        %346 = vperm.xlu0 %345, %v267
        %v347 = vpop.permute.xlu0 %346
        %v349 = vlaneseq
        %v350 = vshrl.u32 %v349, 7
        %v351 = vsub.s32 7, %v350
        %v352 = vrot.slane %v259, %v351
        %v353 = vmin.f32 %v347, %v352
        %354 = vset.pattern.permute.xlu0 32
        %355 = vperm.xlu0 %354, %v266
        %v356 = vpop.permute.xlu0 %355
        %v358 = vlaneseq
        %v359 = vshrl.u32 %v358, 7
        %v360 = vsub.s32 5, %v359
        %v361 = vrot.slane %v259, %v360
        %v362 = vmax.f32 %v356, %v361
        %v363 = vsub.f32 %v353, %v362
        %v364 = vmax.f32 %v363, 0.0
        %365 = vset.pattern.permute.xlu0 33
        %366 = vperm.xlu0 %365, %v267
        %v367 = vpop.permute.xlu0 %366
        %v369 = vlaneseq
        %v370 = vshrl.u32 %v369, 7
        %v371 = vsub.s32 0, %v370
        %v372 = vrot.slane %v260, %v371
        %v373 = vmin.f32 %v367, %v372
        %374 = vset.pattern.permute.xlu0 33
        %375 = vperm.xlu0 %374, %v266
        %v376 = vpop.permute.xlu0 %375
        %v378 = vlaneseq
        %v379 = vshrl.u32 %v378, 7
        %v380 = vsub.s32 6, %v379
        %v381 = vrot.slane %v259, %v380
        %v382 = vmax.f32 %v376, %v381
        %v383 = vsub.f32 %v373, %v382
        %v384 = vmax.f32 %v383, 0.0
        %v385 = vmul.f32 %v364, %v384
        %386 = vset.pattern.permute.xlu0 32
        %387 = vperm.xlu0 %386, %v273
        %v388 = vpop.permute.xlu0 %387
        %v390 = vlaneseq
        %v391 = vshrl.u32 %v390, 7
        %v392 = vsub.s32 1, %v391
        %v393 = vrot.slane %v260, %v392
        %v394 = vadd.f32 %v388, %v393
        %v395 = vsub.f32 %v394, %v385
        %v396 = vmax.f32 %v347, %v352
        %v397 = vmin.f32 %v356, %v361
        %v398 = vsub.f32 %v396, %v397
        %v399 = vmax.f32 %v367, %v372
        %v400 = vmin.f32 %v376, %v381
        %v401 = vsub.f32 %v399, %v400
        %v402 = vmax.f32 %v398, 0.0
        %v403 = vmax.f32 %v401, 0.0
        %v404 = vmul.f32 %v402, %v403
        %v405 = vsub.f32 %v404, %v395
        %v406 = vmul.f32 %v395, %v405
        %v407 = vmul.f32 %v385, %v404
        %v408 = vsub.f32 %v406, %v407
        %v409 = vmul.f32 %v395, %v404
        %v410 = vadd.f32 %v409, 1e-20
        %v411 = vrcp.pop %v410
        %v412 = vmul.f32 %v408, %v411
        %v413 = vlaneseq
        %v414 = vshrl.u32 %v413, 7
        %v415 = vsub.s32 3, %v414
        %v416 = vrot.slane %v260, %v415
        %v417 = vmul.f32 %v344, %v416
        %v418 = vadd.f32 %v412, %v417
        %v419 = vmax.f32 %v344, %v418
        %421 = vset.pattern.permute.xlu0 28
        %422 = vperm.xlu0 %421, %v257
        %v423 = vpop.permute.xlu0 %422
        %v425 = vlaneseq
        %v426 = vshrl.u32 %v425, 7
        %v427 = vsub.s32 0, %v426
        %v428 = vrot.slane %v258, %v427
        %v429 = vsub.f32 %v423, %v428
        %v430 = vand.u32 2147483647, %v429
        %431 = vset.pattern.permute.xlu0 29
        %432 = vperm.xlu0 %431, %v257
        %v433 = vpop.permute.xlu0 %432
        %v435 = vlaneseq
        %v436 = vshrl.u32 %v435, 7
        %v437 = vsub.s32 1, %v436
        %v438 = vrot.slane %v258, %v437
        %v439 = vsub.f32 %v433, %v438
        %v440 = vand.u32 2147483647, %v439
        %v441 = vadd.f32 %v430, %v440
        %442 = vset.pattern.permute.xlu0 30
        %443 = vperm.xlu0 %442, %v257
        %v444 = vpop.permute.xlu0 %443
        %v446 = vlaneseq
        %v447 = vshrl.u32 %v446, 7
        %v448 = vsub.s32 2, %v447
        %v449 = vrot.slane %v258, %v448
        %v450 = vsub.f32 %v444, %v449
        %v451 = vand.u32 2147483647, %v450
        %v452 = vadd.f32 %v441, %v451
        %453 = vset.pattern.permute.xlu0 31
        %454 = vperm.xlu0 %453, %v257
        %v455 = vpop.permute.xlu0 %454
        %v457 = vlaneseq
        %v458 = vshrl.u32 %v457, 7
        %v459 = vsub.s32 3, %v458
        %v460 = vrot.slane %v258, %v459
        %v461 = vsub.f32 %v455, %v460
        %v462 = vand.u32 2147483647, %v461
        %v463 = vadd.f32 %v452, %v462
        %464 = vset.pattern.permute.xlu0 32
        %465 = vperm.xlu0 %464, %v257
        %v466 = vpop.permute.xlu0 %465
        %v468 = vlaneseq
        %v469 = vshrl.u32 %v468, 7
        %v470 = vsub.s32 4, %v469
        %v471 = vrot.slane %v258, %v470
        %v472 = vsub.f32 %v466, %v471
        %v473 = vand.u32 2147483647, %v472
        %474 = vset.pattern.permute.xlu0 33
        %475 = vperm.xlu0 %474, %v257
        %v476 = vpop.permute.xlu0 %475
        %v478 = vlaneseq
        %v479 = vshrl.u32 %v478, 7
        %v480 = vsub.s32 5, %v479
        %v481 = vrot.slane %v258, %v480
        %v482 = vsub.f32 %v476, %v481
        %v483 = vand.u32 2147483647, %v482
        %v484 = vadd.f32 %v473, %v483
        %485 = vset.pattern.permute.xlu0 34
        %486 = vperm.xlu0 %485, %v257
        %v487 = vpop.permute.xlu0 %486
        %v489 = vlaneseq
        %v490 = vshrl.u32 %v489, 7
        %v491 = vsub.s32 6, %v490
        %v492 = vrot.slane %v258, %v491
        %v493 = vsub.f32 %v487, %v492
        %v494 = vand.u32 2147483647, %v493
        %v495 = vadd.f32 %v484, %v494
        %496 = vset.pattern.permute.xlu0 35
        %497 = vperm.xlu0 %496, %v257
        %v498 = vpop.permute.xlu0 %497
        %v500 = vlaneseq
        %v501 = vshrl.u32 %v500, 7
        %v502 = vsub.s32 7, %v501
        %v503 = vrot.slane %v258, %v502
        %v504 = vsub.f32 %v498, %v503
        %v505 = vand.u32 2147483647, %v504
        %v506 = vadd.f32 %v495, %v505
        %v507 = vlaneseq
        %v508 = vshrl.u32 %v507, 7
        %v509 = vsub.s32 2, %v508
        %v510 = vrot.slane %v260, %v509
        %v511 = vmul.f32 %v506, %v510
        %v512 = vmax.f32 %v463, %v511
        %v513 = vadd.f32 %v419, %v512
        %vm514 = vcmask 97280
        %v515 = vsel %vm514, %v257, -inf
        %516 = vmax.xlane.f32.xlu0 %v515
        %v517 = vpop.xlane.xlu0 %516
        %v518 = vsub.f32 %v257, %v517
        %v519 = vmul.f32 %v518, 1.442695
        %v520 = vpow.pop %v519
        %v521 = vsel %vm514, %v520, 0.0
        %522 = vadd.xlane.f32.xlu0 %v521
        %v523 = vpop.xlane.xlu0 %522
        %v524 = vrcp.pop %v523
        %v525 = vmul.f32 %v520, %v524
        %v526 = vld [vmem:[#allocation4] sm:$0xff]
        %v527 = vld [vmem:[#allocation4 + $0x8] sm:$0xf]
        %v529 = vsel %vm514, %v525, 0
        %vm531 = vcmask 1043456
        %v533 = vsel %vm531, %v527, 0
        %535 = vmatprep.subr.mxu0 0.0
        %536 = vmatpush1.msra.mxu0 0.0
        %537 = vmatprep.subr.mxu0 0.0
        %538 = vmatpush1.msra.mxu0 0.0
        %539 = vmatprep.subr.mxu0 0.0
        %540 = vmatpush1.msra.mxu0 0.0
        %541 = vmatprep.subr.mxu0 0.0
        %542 = vmatpush1.msra.mxu0 0.0
        %543 = vmatprep.subr.mxu0 0.0
        %544 = vmatpush1.msra.mxu0 0.0
        %545 = vmatprep.subr.mxu0 0.0
        %546 = vmatpush1.msra.mxu0 0.0
        %547 = vmatprep.subr.mxu0 0.0
        %548 = vmatpush1.msra.mxu0 0.0
        %549 = vmatprep.subr.mxu0 0.0
        %550 = vmatpush1.msra.mxu0 0.0
        %551 = vmatprep.subr.mxu0 0.0
        %552 = vmatpush1.msra.mxu0 0.0
        %553 = vmatprep.subr.mxu0 0.0
        %554 = vmatpush1.msra.mxu0 0.0
        %555 = vmatprep.subr.mxu0 0.0
        %556 = vmatpush1.msra.mxu0 0.0
        %557 = vmatprep.subr.mxu0 0.0
        %558 = vmatpush1.msra.mxu0 0.0
        %559 = vmatprep.subr.mxu0 0.0
        %560 = vmatpush1.msra.mxu0 0.0
        %561 = vmatprep.subr.mxu0 0.0
        %562 = vmatpush1.msra.mxu0 0.0
        %563 = vmatprep.subr.mxu0 0.0
        %564 = vmatpush1.msra.mxu0 %v533
        %565 = vmatprep.subr.mxu0 0.0
        %566 = vmatpush1.msra.mxu0 %v526
        %567 = vmatprep.subr.mxu0 0.0
        %568 = vmatpush2.msra.mxu0 0.0
        %569 = vmatprep.subr.mxu0 0.0
        %570 = vmatpush2.msra.mxu0 0.0
        %571 = vmatprep.subr.mxu0 0.0
        %572 = vmatpush2.msra.mxu0 0.0
        %573 = vmatprep.subr.mxu0 0.0
        %574 = vmatpush2.msra.mxu0 0.0
        %575 = vmatprep.subr.mxu0 0.0
        %576 = vmatpush2.msra.mxu0 0.0
        %577 = vmatprep.subr.mxu0 0.0
        %578 = vmatpush2.msra.mxu0 0.0
        %579 = vmatprep.subr.mxu0 0.0
        %580 = vmatpush2.msra.mxu0 0.0
        %581 = vmatprep.subr.mxu0 0.0
        %582 = vmatpush2.msra.mxu0 0.0
        %583 = vmatprep.subr.mxu0 0.0
        %584 = vmatpush2.msra.mxu0 0.0
        %585 = vmatprep.subr.mxu0 0.0
        %586 = vmatpush2.msra.mxu0 0.0
        %587 = vmatprep.subr.mxu0 0.0
        %588 = vmatpush2.msra.mxu0 0.0
        %589 = vmatprep.subr.mxu0 0.0
        %590 = vmatpush2.msra.mxu0 0.0
        %591 = vmatprep.subr.mxu0 0.0
        %592 = vmatpush2.msra.mxu0 0.0
        %593 = vmatprep.subr.mxu0 0.0
        %594 = vmatpush2.msra.mxu0 0.0
        %595 = vmatprep.subr.mxu0 0.0
        %596 = vmatpush2.msra.mxu0 0.0
        %597 = vmatprep.subr.mxu0 0.0
        %598 = vmatpush2.msra.mxu0 0.0
        %599 = vmatprep.mubr.f32.mxu0 0.0
        %600 = vmatmul.mubr.f32.gmra.mxu0 %v529
        %v601 = vpop.f32.mrf.mxu0
        %v602 = vadd.f32 0.0, %v601
        %v603 = vpop.f32.mrf.mxu0
        %604 = vdwg.mxu0
        %v605 = vsub.f32 %v513, %v602
        %v606 = vxor.u32 %v257, 2147483648
        %v607 = vmul.f32 %v606, 1.442695
        %v608 = vpow.pop %v607
        %v609 = vadd.f32 %v608, 1.0
        %v610 = vrcp.pop %v609
        %v611 = vmul.f32 1.0, %v610
        %v612 = vld [vmem:[#allocation7] sm:$0xff]
        %v613 = vld [vmem:[#allocation7 + $0x8] sm:$0xff]
        %615 = vrot.lane.b32.xlu0 %v611, 116
        %v616 = vpop.permute.xlu0 %615
        %vm617 = vcmask 130048
        %v618 = vsel %vm617, %v616, 0
        %620 = vmatprep.subr.mxu0 0.0
        %621 = vmatpush1.msra.mxu0 0.0
        %622 = vmatprep.subr.mxu0 0.0
        %623 = vmatpush1.msra.mxu0 0.0
        %624 = vmatprep.subr.mxu0 0.0
        %625 = vmatpush1.msra.mxu0 0.0
        %626 = vmatprep.subr.mxu0 0.0
        %627 = vmatpush1.msra.mxu0 0.0
        %628 = vmatprep.subr.mxu0 0.0
        %629 = vmatpush1.msra.mxu0 0.0
        %630 = vmatprep.subr.mxu0 0.0
        %631 = vmatpush1.msra.mxu0 0.0
        %632 = vmatprep.subr.mxu0 0.0
        %633 = vmatpush1.msra.mxu0 0.0
        %634 = vmatprep.subr.mxu0 0.0
        %635 = vmatpush1.msra.mxu0 0.0
        %636 = vmatprep.subr.mxu0 0.0
        %637 = vmatpush1.msra.mxu0 0.0
        %638 = vmatprep.subr.mxu0 0.0
        %639 = vmatpush1.msra.mxu0 0.0
        %640 = vmatprep.subr.mxu0 0.0
        %641 = vmatpush1.msra.mxu0 0.0
        %642 = vmatprep.subr.mxu0 0.0
        %643 = vmatpush1.msra.mxu0 0.0
        %644 = vmatprep.subr.mxu0 0.0
        %645 = vmatpush1.msra.mxu0 0.0
        %646 = vmatprep.subr.mxu0 0.0
        %647 = vmatpush1.msra.mxu0 0.0
        %648 = vmatprep.subr.mxu0 0.0
        %649 = vmatpush1.msra.mxu0 %v613
        %650 = vmatprep.subr.mxu0 0.0
        %651 = vmatpush1.msra.mxu0 %v612
        %652 = vmatprep.subr.mxu0 0.0
        %653 = vmatpush2.msra.mxu0 0.0
        %654 = vmatprep.subr.mxu0 0.0
        %655 = vmatpush2.msra.mxu0 0.0
        %656 = vmatprep.subr.mxu0 0.0
        %657 = vmatpush2.msra.mxu0 0.0
        %658 = vmatprep.subr.mxu0 0.0
        %659 = vmatpush2.msra.mxu0 0.0
        %660 = vmatprep.subr.mxu0 0.0
        %661 = vmatpush2.msra.mxu0 0.0
        %662 = vmatprep.subr.mxu0 0.0
        %663 = vmatpush2.msra.mxu0 0.0
        %664 = vmatprep.subr.mxu0 0.0
        %665 = vmatpush2.msra.mxu0 0.0
        %666 = vmatprep.subr.mxu0 0.0
        %667 = vmatpush2.msra.mxu0 0.0
        %668 = vmatprep.subr.mxu0 0.0
        %669 = vmatpush2.msra.mxu0 0.0
        %670 = vmatprep.subr.mxu0 0.0
        %671 = vmatpush2.msra.mxu0 0.0
        %672 = vmatprep.subr.mxu0 0.0
        %673 = vmatpush2.msra.mxu0 0.0
        %674 = vmatprep.subr.mxu0 0.0
        %675 = vmatpush2.msra.mxu0 0.0
        %676 = vmatprep.subr.mxu0 0.0
        %677 = vmatpush2.msra.mxu0 0.0
        %678 = vmatprep.subr.mxu0 0.0
        %679 = vmatpush2.msra.mxu0 0.0
        %680 = vmatprep.subr.mxu0 0.0
        %681 = vmatpush2.msra.mxu0 0.0
        %682 = vmatprep.subr.mxu0 0.0
        %683 = vmatpush2.msra.mxu0 0.0
        %684 = vmatprep.mubr.f32.mxu0 0.0
        %685 = vmatmul.mubr.f32.gmra.mxu0 %v618
        %v686 = vpop.f32.mrf.mxu0
        %v687 = vadd.f32 0.0, %v686
        %v688 = vpop.f32.mrf.mxu0
        %689 = vdwg.mxu0
        %v691 = vsel %vm617, %v616, 0.0
        %692 = vadd.xlane.f32.xlu0 %v691
        %v693 = vpop.xlane.xlu0 %692
        %v694 = vsub.f32 16.0, %v693
        %v695 = vlaneseq
        %v696 = vshrl.u32 %v695, 7
        %v697 = vsub.s32 4, %v696
        %v698 = vrot.slane %v260, %v697
        %v699 = vsub.f32 %v694, %v698
        %v700 = vadd.f32 %v699, %v687
        %v701 = vlaneseq
        %v702 = vshrl.u32 %v701, 7
        %v703 = vsub.s32 5, %v702
        %v704 = vrot.slane %v260, %v703
        %v705 = vmul.f32 %v687, %v704
        %v706 = vlaneseq
        %v707 = vshrl.u32 %v706, 7
        %v708 = vsub.s32 6, %v707
        %v709 = vrot.slane %v260, %v708
        %v710 = vmul.f32 %v700, %v709
        %v711 = vadd.f32 %v705, %v710
        %v712 = vmul.f32 %v711, 0.5
        %v713 = vsub.f32 %v605, %v712
        %714 = vst [vmem:[%s256] sm:$0xff] %v713
        %p715 = scmp.lt.s32.totalorder %s20, 1
        %s716 = scalar_select %p715, %s20, 1
        %s717 = smul.addr %s716, 8
        %s718 = scalar_lea.vmem %s4, %s717
        // Predicated region
        $region53: #{fn.1} parent=35 // pred_check
          %p719 = pneg %p127
        $region54: #{fn.1} parent=35 // pred_check_branch
          %721 = sbr.rel (%p719) target = $region56
        $region55: #{fn.1} parent=35 // pred_region
          _
        $region56: #{fn.1} parent=35 // pred_fallthru
          _
      $region36: #{fn.1} parent=5 // pred_fallthru
        _
      %p722 = scmp.le.s32.totalorder 2, %s15
      // Predicated region
      $region57: #{fn.1} parent=5 // pred_check
        %p723 = pneg %p722
      $region58: #{fn.1} parent=5 // pred_check_branch
        %725 = sbr.rel (%p723) target = $region60
      $region59: #{fn.1} parent=5 // pred_region
        %s726 = ssub.s32 %s15, 2
        // Predicated region
        $region61: #{fn.1} parent=59 // pred_check
          %p727 = pneg %p133
        $region62: #{fn.1} parent=59 // pred_check_branch
          %729 = sbr.rel (%p727) target = $region64
        $region63: #{fn.1} parent=59 // pred_region
          %p730 = scmp.lt.s32.totalorder %s21, 1
          %s731 = scalar_select %p730, %s21, 1
          %s732 = smul.addr %s731, 8
          %s733 = scalar_lea.vmem %s4, %s732
        $region64: #{fn.1} parent=59 // pred_fallthru
          _
      $region60: #{fn.1} parent=5 // pred_fallthru
        _
    $region6: #{fn.1} parent=1 // loop_footer
      %s19 = sadd.s32 1, %s15
    $region7: #{fn.1} parent=1 // loop_footer_branch
      %14 = sbr.rel target = $region3
    $region8: #{fn.1} parent=1 // loop_exit
      _
    %734 = vsyncpa [#allocation3], 1
    %s735 = scalar_lea.sflag [#allocation3], 1
    %736 = vsyncpa %s735, 1
    %737 = vsyncpa [#allocation5], 1
    %738 = vsyncpa [#allocation8], 1

</llo_original>
